<compile_context>
chip_gen: v7x
topology: tpu7x:2x2x1
jax: 0.10.0
libtpu: 0.0.40
codegen_flags: <defaults>
</compile_context>

<pallas_src>
import functools

import numpy as np
import jax
import jax.numpy as jnp
from jax.experimental import pallas as pl
from jax.experimental.pallas import tpu as pltpu


# ----------------------------------------------------------------------------
# Tiling helpers
# ----------------------------------------------------------------------------
def _pick_lane_tile(hw, max_elems):
    """Largest divisor of hw that is a multiple of 128 and <= max_elems."""
    if hw % 128 != 0:
        # TODO(synk): pad HW up to a multiple of 128 for odd sensor crops; for
        # now fall back to a single full-width block.
        return hw
    best = 128
    d = 128
    limit = min(hw, max(int(max_elems), 128))
    while d <= limit:
        if hw % d == 0:
            best = d
        d += 128
    return best


def _vmem_limit(block_bytes):
    """vmem_limit_bytes sized from one copy of each block (inputs/outputs are
    double-buffered by the pipeline), with headroom, capped below v7x's
    64 MiB physical VMEM."""
    return int(min(60 * 2**20, max(32 * 2**20, 4 * int(block_bytes))))


# ----------------------------------------------------------------------------
# Kernel 1: raw frames -> time/channel-averaged linear intensity (bf16 out)
# ----------------------------------------------------------------------------
def _intensity_kernel(raw_ref, out_ref, *, dark, scale):
    # raw_ref: (B, T*C, thw) raw demosaicked camera counts (f32)
    # out_ref: (B, thw)      linear intensity, bf16 (cast once on store)
    # NOTE: T*C sits on the sublane axis (usually not a multiple of 8); the
    # vreg padding this costs is accepted -- the kernel is HBM-bound on raw.
    s = jnp.sum(raw_ref[...], axis=1)                       # (B, thw) f32
    out_ref[...] = ((s - dark) * scale).astype(out_ref.dtype)


def _compute_intensity(raw, *, time_avg):
    """raw: (B, T*C, HW) f32 -> intensity (B, HW) bf16 (one pass over raw)."""
    B, TC, HW = raw.shape
    # Largest lane tile dividing HW, with the f32 input block capped at ~4 MiB.
    thw = _pick_lane_tile(HW, (4 * 2**20) // (B * TC * 4))
    in_bytes = B * TC * thw * 4
    out_bytes = B * thw * 2
    kernel = functools.partial(
        _intensity_kernel,
        dark=64.0 * TC,                                     # dark level per tap
        scale=1.0 / (65535.0 * float(time_avg)))            # im2float + time avg
    return pl.pallas_call(
        kernel,
        out_shape=jax.ShapeDtypeStruct((B, HW), jnp.bfloat16),
        grid=(HW // thw,),
        in_specs=[pl.BlockSpec((B, TC, thw), lambda i: (0, 0, i))],
        out_specs=pl.BlockSpec((B, thw), lambda i: (0, i)),
        compiler_params=pltpu.CompilerParams(
            dimension_semantics=("parallel",),
            vmem_limit_bytes=_vmem_limit(in_bytes + out_bytes)),
    )(raw)


# ----------------------------------------------------------------------------
# Kernel 2: corner-row-split band-sparse homography warp (bf16 MXU) + sqrt
# ----------------------------------------------------------------------------
def _warp_kernel(kstart_ref, knum_ref, inten_ref, sband_ref, out_ref, acc_ref,
                 *, n_groups):
    n = pl.program_id(0)        # output tile                  ("parallel")
    g = pl.program_id(1)        # bilinear corner-row group    ("arbitrary")
    kb = pl.program_id(2)       # band step within the group   ("arbitrary")

    @pl.when((g == 0) & (kb == 0))
    def _init():
        acc_ref[...] = jnp.zeros_like(acc_ref)

    # Dead band steps only skip the matmul; their DMAs were already elided by
    # the clamped index maps (they re-request the previous live block).
    @pl.when(kb < knum_ref[n * n_groups + g])
    def _accum():
        acc_ref[...] += jnp.dot(inten_ref[...], sband_ref[0, 0],
                                preferred_element_type=jnp.float32)

    @pl.when((g == pl.num_programs(1) - 1) & (kb == pl.num_programs(2) - 1))
    def _finalize():
        # intensity -> amplitude.  Clamp at 0 so a slightly negative
        # dark-subtracted / bf16-rounded intensity doesn't turn into NaN
        # (real sensors can dip below the dark level).
        out_ref[...] = jnp.sqrt(jnp.maximum(acc_ref[...], 0.0))


def _warp_amplitude(intensity, s_band, kstart, knum, *, tk, tn, max_kb,
                    n_groups):
    """intensity: (B, HW) bf16; s_band: (n_tiles*n_groups, max_kb, tk, tn)."""
    B, HW = intensity.shape
    n_tiles = s_band.shape[0] // n_groups

    # index_maps get (grid idx..., *scalar-prefetch refs).  Steps past a
    # tile/group's band clamp kb to the last live block so consecutive dead
    # steps repeat the previous block index and the pipeline elides the copy.
    def _kb_eff(n, g, kb, knum_ref):
        return jnp.maximum(jnp.minimum(kb, knum_ref[n * n_groups + g] - 1), 0)

    def inten_map(n, g, kb, kstart_ref, knum_ref):
        return (0, kstart_ref[n * n_groups + g] + _kb_eff(n, g, kb, knum_ref))

    def sband_map(n, g, kb, kstart_ref, knum_ref):
        return (n * n_groups + g, _kb_eff(n, g, kb, knum_ref), 0, 0)

    def out_map(n, g, kb, kstart_ref, knum_ref):
        return (0, n)

    block_bytes = tk * tn * 2 + B * tk * 2 + 2 * B * tn * 4   # sband+lhs+out+acc
    return pl.pallas_call(
        functools.partial(_warp_kernel, n_groups=n_groups),
        out_shape=jax.ShapeDtypeStruct((B, HW), jnp.float32),
        grid_spec=pltpu.PrefetchScalarGridSpec(
            num_scalar_prefetch=2,
            grid=(n_tiles, n_groups, max_kb),
            in_specs=[pl.BlockSpec((B, tk), inten_map),
                      pl.BlockSpec((1, 1, tk, tn), sband_map)],
            out_specs=pl.BlockSpec((B, tn), out_map),
            scratch_shapes=[pltpu.VMEM((B, tn), jnp.float32)]),
        compiler_params=pltpu.CompilerParams(
            dimension_semantics=("parallel", "arbitrary", "arbitrary"),
            vmem_limit_bytes=_vmem_limit(block_bytes)),
    )(kstart, knum, intensity, s_band)


# ----------------------------------------------------------------------------
# Calibration glue: corner-row-split band-compact bilinear warp tensor
# ----------------------------------------------------------------------------
def _bilinear_corners(h_mat, H, W):
    """4 (source_flat_index, weight) planes for bilinear sampling under a 3x3
    homography mapping output coords (x, y, 1) -> source coords (zero pad OOB).
    Corner order: (y0,x0), (y0,x1), (y1,x0), (y1,x1) -- top row first."""
    h_mat = np.asarray(h_mat, np.float64)
    ys, xs = np.meshgrid(np.arange(H, dtype=np.float64),
                         np.arange(W, dtype=np.float64), indexing="ij")
    coords = np.stack([xs.reshape(-1), ys.reshape(-1),
                       np.ones(H * W, np.float64)], axis=0)          # (3, HW)
    src = h_mat @ coords
    sx = src[0] / src[2]
    sy = src[1] / src[2]

    x0f, y0f = np.floor(sx), np.floor(sy)
    x0, y0 = x0f.astype(np.int64), y0f.astype(np.int64)
    x1, y1 = x0 + 1, y0 + 1
    wx1, wy1 = sx - x0f, sy - y0f
    wx0, wy0 = 1.0 - wx1, 1.0 - wy1

    corners = []
    for yc, xc, w in ((y0, x0, wy0 * wx0), (y0, x1, wy0 * wx1),
                      (y1, x0, wy1 * wx0), (y1, x1, wy1 * wx1)):
        valid = (xc >= 0) & (xc < W) & (yc >= 0) & (yc < H)
        q = np.clip(yc, 0, H - 1) * W + np.clip(xc, 0, W - 1)
        corners.append((q.astype(np.int64),
                        np.where(valid, w, 0.0).astype(np.float32)))
    return corners


def build_warper(h_mat, H, W, *, tk=None, tn=None, s_dtype=jnp.bfloat16):
    """Precompute (at calibration time) the band-compact warp tensor.

    The bilinear stencil is split per source corner ROW (group 0: y0 corners,
    group 1: y1 corners); each group's band per output tile spans only a
    couple of tk-wide source blocks for a calibration homography, so storage /
    HBM traffic are O(HW * tk), not O(HW * W).
    s_band[n*n_groups+g, kb, r, c] = weight of source pixel
    (kstart[n*n_groups+g] + kb)*tk + r for output pixel n*tn + c.

    NOTE: bf16 weights + bf16 intensity on the MXU are the precision floor
    (~1e-2 relative near zero-amplitude pixels after the sqrt).
    """
    HW = H * W
    if tk is None:
        tk = 128 if HW % 128 == 0 else HW
    if tn is None:
        # 256 fills the 256-lane MXUs of v6e/v7x; pass tn=128 on v5e (4x128^2).
        tn = 256 if HW % 256 == 0 else (128 if HW % 128 == 0 else HW)
    assert HW % tk == 0 and HW % tn == 0, (HW, tk, tn)
    n_tiles = HW // tn
    k_blocks = HW // tk

    corners = _bilinear_corners(h_mat, H, W)
    groups = (corners[:2], corners[2:])          # (top y0 row, bottom y1 row)
    n_groups = len(groups)

    p = np.arange(HW)
    tile_n = p // tn
    col = p % tn

    # Per-(group, output tile) range of source k-blocks carrying any weight.
    kb_lo = np.full((n_groups, n_tiles), k_blocks, np.int64)
    kb_hi = np.full((n_groups, n_tiles), -1, np.int64)
    for g, grp in enumerate(groups):
        for q, w in grp:
            live = w > 0.0
            if np.any(live):
                np.minimum.at(kb_lo[g], tile_n[live], (q // tk)[live])
                np.maximum.at(kb_hi[g], tile_n[live], (q // tk)[live])
    any_gt = kb_hi >= 0
    max_kb = int(max(int(np.max(np.where(any_gt, kb_hi - kb_lo + 1, 0))), 1))

    # Shift windows so kstart + max_kb - 1 <= k_blocks - 1: the kernel's
    # index_maps never emit an out-of-range block index (no clamp needed there
    # beyond the dead-step clamp).
    kstart = np.clip(np.where(any_gt, kb_lo, 0), 0,
                     max(k_blocks - max_kb, 0)).astype(np.int64)
    knum = np.where(any_gt, kb_hi - kstart + 1, 0).astype(np.int64)

    # Scatter each group's bilinear weights into its band blocks, verifying
    # the window invariant at build time.
    s_band = np.zeros((n_tiles, n_groups, max_kb, tk, tn), np.float32)
    for g, grp in enumerate(groups):
        for q, w in grp:
            rel = q // tk - kstart[g, tile_n]
            live = w > 0.0
            assert np.all((rel[live] >= 0) & (rel[live] < max_kb)), \
                "bilinear weight falls outside its tile's band window"
            rel = np.clip(rel, 0, max_kb - 1)        # dead weights are 0 anyway
            np.add.at(s_band, (tile_n, g, rel, q % tk, col),
                      np.where(live, w, 0.0))

    s_band = s_band.reshape(n_tiles * n_groups, max_kb, tk, tn)
    kstart = np.transpose(kstart).reshape(-1)        # flat index n*n_groups+g
    knum = np.transpose(knum).reshape(-1)

    return dict(s_band=jnp.asarray(s_band, s_dtype),
                kstart=jnp.asarray(kstart, jnp.int32),
                knum=jnp.asarray(knum, jnp.int32),
                H=H, W=W, tk=tk, tn=tn, max_kb=max_kb, n_groups=n_groups)


# ----------------------------------------------------------------------------
# PhysicalProp-like wrapper (forward pass semantics)
# ----------------------------------------------------------------------------
def physical_prop_forward(slm_phase, raw_frames, warper, q_fn=None, time_avg=1):
    """Mirrors PhysicalProp.forward(slm_phase, time_avg).
    slm_phase:  (B, 1, H, W)            phase shown on the SLM (hardware I/O)
    raw_frames: (B, time_avg, C, H, W)  demosaicked camera counts
    returns captured amplitude (B, 1, H, W)."""
    dp_phase = q_fn(slm_phase) if q_fn is not None else slm_phase
    del dp_phase  # TODO(synk): display_slm_phase / serial-triggered camera
    #              capture are physical hardware I/O - no Pallas equivalent;
    #              the captured raw frames are supplied as an input instead.
    # TODO(synk): cv2 Bayer demosaicking has no clean Pallas equivalent;
    #             raw_frames are assumed already demosaicked.
    B, T, C, H, W = raw_frames.shape
    raw = raw_frames.reshape(B, T * C, H * W)        # zero-copy; T*C on sublanes
    intensity = _compute_intensity(raw, time_avg=time_avg)       # (B, HW) bf16
    amp = _warp_amplitude(intensity, warper["s_band"], warper["kstart"],
                          warper["knum"], tk=warper["tk"], tn=warper["tn"],
                          max_kb=warper["max_kb"], n_groups=warper["n_groups"])
    return amp.reshape(B, 1, H, W)


# ----------------------------------------------------------------------------
# Pure-JAX references for verification
# ----------------------------------------------------------------------------
def reference_intensity_f32(raw_frames, time_avg):
    lin = (raw_frames - 64.0) / 65535.0
    return lin.sum(axis=2).sum(axis=1) / time_avg            # (B, H, W)


def reference_forward_f32(raw_frames, h_mat, time_avg):
    B, T, C, H, W = raw_frames.shape
    flat = reference_intensity_f32(raw_frames, time_avg).reshape(B, H * W)
    warped = jnp.zeros_like(flat)
    for q, w in _bilinear_corners(h_mat, H, W):
        warped = warped + jnp.asarray(w)[None, :] * flat[:, q]
    return jnp.sqrt(warped).reshape(B, 1, H, W)


if __name__ == "__main__":
    B, C, H, W = 2, 3, 16, 16
    time_avg = 2

    key = jax.random.PRNGKey(0)
    k_phase, k_raw = jax.random.split(key)

    # SLM phase pattern (forward() input), [batch, 1, height, width]
    slm_phase = jax.random.uniform(k_phase, (B, 1, H, W), jnp.float32,
                                   minval=-jnp.pi, maxval=jnp.pi)

    # Simulated 12-bit camera counts after demosaicking (dark level 64),
    # one stack of `time_avg` frames per batch element.
    raw_frames = jax.random.uniform(k_raw, (B, time_avg, C, H, W), jnp.float32,
                                    minval=64.0, maxval=4000.0)

    # Deterministic "pre-calibrated" homography (near identity).
    h_mat = jnp.array([[0.98, 0.02, 0.6],
                       [-0.015, 1.01, -0.4],
                       [1e-4, -5e-5, 1.0]], jnp.float32)
    warper = build_warper(h_mat, H, W)

    captured_amp = physical_prop_forward(slm_phase, raw_frames, warper,
                                         q_fn=None, time_avg=time_avg)
    captured_amp = jax.block_until_ready(captured_amp)
    assert captured_amp.shape == (B, 1, H, W)
    assert bool(jnp.isfinite(captured_amp).all())

    # Intensity kernel check (bf16 output -> bf16-level tolerance).
    inten_kernel = _compute_intensity(
        raw_frames.reshape(B, time_avg * C, H * W), time_avg=time_avg)
    inten_ref = reference_intensity_f32(raw_frames, time_avg).reshape(B, H * W)
    assert bool(jnp.allclose(inten_kernel.astype(jnp.float32), inten_ref,
                             atol=2e-3, rtol=1.5e-2))

    # End-to-end check (bf16 intensity + bf16 warp weights are the floor).
    ref = reference_forward_f32(raw_frames, h_mat, time_avg)
    assert bool(jnp.allclose(captured_amp, ref, atol=2e-2, rtol=2e-2))

    print("KERNEL_OK")
</pallas_src>

<mosaic_0001>
module attributes {stable_mosaic.version = 11 : i64} {
  func.func @_intensity_kernel(%arg0: i32, %arg1: memref<2x6x256xf32, #tpu.memory_space<vmem>>, %arg2: memref<2x256xbf16, #tpu.memory_space<vmem>>) attributes {dimension_semantics = [#tpu.dimension_semantics<parallel>], iteration_bounds = array<i64: 1>, scalar_prefetch = 0 : i64, scratch_operands = 0 : i64, tpu.core_type = #tpu.core_type<tc>, window_params = [{transform_indices = @transform_0, window_bounds = array<i64: 2, 6, 256>}, {transform_indices = @transform_1, window_bounds = array<i64: 2, 256>}]} {
    %c0 = arith.constant 0 : index
    %c0_0 = arith.constant 0 : index
    %c0_1 = arith.constant 0 : index
    %0 = vector.load %arg1[%c0, %c0_0, %c0_1] : memref<2x6x256xf32, #tpu.memory_space<vmem>>, vector<2x6x256xf32>
    %cst = arith.constant dense<0.000000e+00> : vector<2x256xf32>
    %1 = vector.multi_reduction <add>, %0, %cst [1] : vector<2x6x256xf32> to vector<2x256xf32>
    %cst_2 = arith.constant 3.840000e+02 : f32
    %2 = vector.broadcast %cst_2 : f32 to vector<2x256xf32>
    %3 = arith.subf %1, %2 : vector<2x256xf32>
    %cst_3 = arith.constant 7.62951095E-6 : f32
    %4 = vector.broadcast %cst_3 : f32 to vector<2x256xf32>
    %5 = arith.mulf %3, %4 : vector<2x256xf32>
    %6 = arith.truncf %5 : vector<2x256xf32> to vector<2x256xbf16>
    %c0_4 = arith.constant 0 : index
    %c0_5 = arith.constant 0 : index
    %7 = vector.load %arg2[%c0_4, %c0_5] : memref<2x256xbf16, #tpu.memory_space<vmem>>, vector<2x256xbf16>
    tpu.vector_store %arg2[%c0_4, %c0_5], %6 {strides = array<i32>} : memref<2x256xbf16, #tpu.memory_space<vmem>>, vector<2x256xbf16>,
    return
  }
  func.func @transform_0(%arg0: i32) -> (i32, i32, i32) {
    %c0_i32 = arith.constant 0 : i32
    %c0_i32_0 = arith.constant 0 : i32
    %c0_i32_1 = arith.constant 0 : i32
    return %c0_i32, %c0_i32_0, %arg0 : i32, i32, i32
  }
  func.func @transform_1(%arg0: i32) -> (i32, i32) {
    %c0_i32 = arith.constant 0 : i32
    %c0_i32_0 = arith.constant 0 : i32
    return %c0_i32, %arg0 : i32, i32
  }
}

</mosaic_0001>

<llo_original>
// kernel: tpu_custom_call.1
$region0: #{tpu_custom_call.1}
  #allocation0 [shape = 'u32[]', space=smem, size = 0x4, offset = 0x4, fixed_abs, tag = 'smem constant byte address 0x4 - core index']
  #allocation1 [shape = 'u32[144,128]{1,0:T(1,128)}', space=vmem, size = 0x12000, scoped, tag = 'internal scratch']
  %s0 = inlined_call_operand.vmem [shape: f32[2,6,256], index: 0, kind: input, shape index: {}]
  %s1 = inlined_call_operand.hbm [shape: bf16[2,256], index: 1, kind: output, shape index: {}]
  %s2 = sld [smem:[#allocation0]]
  $region14: #{tpu_custom_call.1} parent=0
    _
  %s4 = ssub.s32 1, %s2
  %s5 = scalar_select 0, %s4, %s2
  $region1: #{tpu_custom_call.1} parent=0
    #allocation2 [shape = 'u8[1024]{0}', space=vmem, size = 0x400, scoped, tag = 'output window, operand 0, single buffered']
    #allocation3 [shape = 's32[1]{0}', space=sflag, size = 0x4, scoped, tag = 'scoped memory for tpu_custom_call.1']
    %6 = vsyncpa [#allocation3], 0
    // Predicated region
    $region2: #{tpu_custom_call.1} parent=1 // pred_check
      _
    $region3: #{tpu_custom_call.1} parent=1 // pred_check_branch
      %8 = sbr.rel (0) target = $region5
    $region4: #{tpu_custom_call.1} parent=1 // pred_region
      _
    $region5: #{tpu_custom_call.1} parent=1 // pred_fallthru
      _
    %v9 = vld [vmem:[%s0] sm:$0x3f]
    %v10 = vld [vmem:[%s0 + $0x8] sm:$0x3f]
    %v11 = vld [vmem:[%s0 + $0x10] sm:$0x3f]
    %v12 = vld [vmem:[%s0 + $0x18] sm:$0x3f]
    %vm13 = vcmask 1045504
    %v14 = vsel %vm13, %v9, 0.0
    %v15 = vrot.slane %v14, 4
    %v16 = vadd.f32 %v14, %v15
    %v17 = vrot.slane %v16, 2
    %v18 = vadd.f32 %v16, %v17
    %v19 = vrot.slane %v18, 1
    %v20 = vadd.f32 %v18, %v19
    %v21 = vsel %vm13, %v10, 0.0
    %v22 = vrot.slane %v21, 4
    %v23 = vadd.f32 %v21, %v22
    %v24 = vrot.slane %v23, 2
    %v25 = vadd.f32 %v23, %v24
    %v26 = vrot.slane %v25, 1
    %v27 = vadd.f32 %v25, %v26
    %v28 = vsel %vm13, %v11, 0.0
    %v29 = vrot.slane %v28, 4
    %v30 = vadd.f32 %v28, %v29
    %v31 = vrot.slane %v30, 2
    %v32 = vadd.f32 %v30, %v31
    %v33 = vrot.slane %v32, 1
    %v34 = vadd.f32 %v32, %v33
    %v35 = vsel %vm13, %v12, 0.0
    %v36 = vrot.slane %v35, 4
    %v37 = vadd.f32 %v35, %v36
    %v38 = vrot.slane %v37, 2
    %v39 = vadd.f32 %v37, %v38
    %v40 = vrot.slane %v39, 1
    %v41 = vadd.f32 %v39, %v40
    %v42 = vsub.f32 %v20, 384.0
    %v43 = vsub.f32 %v27, 384.0
    %v44 = vsub.f32 %v34, 384.0
    %v45 = vsub.f32 %v41, 384.0
    %v46 = vmul.f32 %v42, 7.629511e-06
    %v47 = vmul.f32 %v43, 7.629511e-06
    %v48 = vmul.f32 %v44, 7.629511e-06
    %v49 = vmul.f32 %v45, 7.629511e-06
    %v50 = vpack.c.bf16 %v46, %v46
    %v51 = vpack.c.bf16 %v47, %v47
    %v52 = vpack.c.bf16 %v48, %v48
    %v53 = vpack.c.bf16 %v49, %v49
    %v58 = vcombine.low %v50, %v51
    %v60 = vunpack.c.l.s4 1966171168
    %v61 = vunpack.c.0.s8 %v60
    %v62 = vlaneseq
    %v63 = vshrl.u32 %v62, 7
    %v64 = vsub.s32 %v61, %v63
    %v65 = vrot.slane %v58, %v64
    %v67 = vunpack.c.l.s4 1966171168
    %v68 = vunpack.c.0.s8 %v67
    %v69 = vlaneseq
    %v70 = vshrl.u32 %v69, 7
    %v71 = vsub.s32 %v68, %v70
    %v72 = vrot.slane %v65, %v71
    %v73 = vcombine.low %v52, %v53
    %v75 = vunpack.c.l.s4 1966171168
    %v76 = vunpack.c.0.s8 %v75
    %v77 = vlaneseq
    %v78 = vshrl.u32 %v77, 7
    %v79 = vsub.s32 %v76, %v78
    %v80 = vrot.slane %v73, %v79
    %v82 = vunpack.c.l.s4 1966171168
    %v83 = vunpack.c.0.s8 %v82
    %v84 = vlaneseq
    %v85 = vshrl.u32 %v84, 7
    %v86 = vsub.s32 %v83, %v85
    %v87 = vrot.slane %v80, %v86
    %v89 = vunpack.c.l.s4 1935823168
    %v90 = vunpack.c.0.s8 %v89
    %v91 = vlaneseq
    %v92 = vshrl.u32 %v91, 7
    %v93 = vsub.s32 %v90, %v92
    %v94 = vrot.slane %v72, %v93
    %v96 = vunpack.c.l.s4 1935823168
    %v97 = vunpack.c.0.s8 %v96
    %v98 = vlaneseq
    %v99 = vshrl.u32 %v98, 7
    %v100 = vsub.s32 %v97, %v99
    %v101 = vrot.slane %v94, %v100
    %v103 = vunpack.c.l.s4 1935823168
    %v104 = vunpack.c.0.s8 %v103
    %v105 = vlaneseq
    %v106 = vshrl.u32 %v105, 7
    %v107 = vsub.s32 %v104, %v106
    %v108 = vrot.slane %v87, %v107
    %v110 = vunpack.c.l.s4 1935823168
    %v111 = vunpack.c.0.s8 %v110
    %v112 = vlaneseq
    %v113 = vshrl.u32 %v112, 7
    %v114 = vsub.s32 %v111, %v113
    %v115 = vrot.slane %v108, %v114
    %v116 = vunpack.c.l.b16 %v101
    %v117 = vunpack.c.h.b16 %v101
    %v118 = vunpack.c.l.b16 %v115
    %v119 = vunpack.c.h.b16 %v115
    %v120 = vrot.slane %v118, 7
    %vm121 = vcmask 1041409
    %v122 = vsel %vm121, %v120, %v116
    %v123 = vrot.slane %v119, 7
    %v124 = vsel %vm121, %v123, %v117
    %v125 = vpack.c.b16 %v124, %v122
    %v127 = vunpack.c.l.s4 1966171168
    %v128 = vunpack.c.0.s8 %v127
    %v129 = vlaneseq
    %v130 = vshrl.u32 %v129, 7
    %v131 = vsub.s32 %v128, %v130
    %v132 = vrot.slane %v125, %v131
    %v134 = vunpack.c.l.s4 1966171168
    %v135 = vunpack.c.0.s8 %v134
    %v136 = vlaneseq
    %v137 = vshrl.u32 %v136, 7
    %v138 = vsub.s32 %v135, %v137
    %v139 = vrot.slane %v132, %v138
    %141 = vst [vmem:[#allocation2] sm:$0x3] %v139
    // Predicated region
    $region6: #{tpu_custom_call.1} parent=1 // pred_check
      _
    $region7: #{tpu_custom_call.1} parent=1 // pred_check_branch
      %143 = sbr.rel (0) target = $region9
    $region8: #{tpu_custom_call.1} parent=1 // pred_region
      %s145 = ssub.s32 32, 32
      %146 = vsyncadd [#allocation3], %s145
      %s148 = sshll.u32 [#allocation2], 4
      %s149 = int_to_ptr.vmem [resolvable:$true] %s148
      %151 = dma.vmem_to_hbm [thread:$0]  %s149, 32, %s1, [#allocation3]
    $region9: #{tpu_custom_call.1} parent=1 // pred_fallthru
      _
    // Predicated region
    $region10: #{tpu_custom_call.1} parent=1 // pred_check
      _
    $region11: #{tpu_custom_call.1} parent=1 // pred_check_branch
      %153 = sbr.rel (0) target = $region13
    $region12: #{tpu_custom_call.1} parent=1 // pred_region
      %154 = dma.done [#allocation3], 32
    $region13: #{tpu_custom_call.1} parent=1 // pred_fallthru
      _
    %155 = vsyncpa [#allocation3], 1

</llo_original>
